<compile_context>
chip_gen: v5e
topology: v5e:2x2
jax: 0.10.0
libtpu: 0.0.40
codegen_flags: <defaults>
</compile_context>

<pallas_src>
import functools

import jax
import jax.numpy as jnp
from jax.experimental import pallas as pl
from jax.experimental.pallas import tpu as pltpu

LANES = 128
MAX_BLOCK_ROWS = 4096   # (4096, 128) f32 = 2 MiB per input tile
MAX_SPLITS = 2          # leading "parallel" axis (one per TensorCore on v7x)


def _dice_partial_kernel(x_ref, y_ref, inter_ref, total_ref, *,
                         block_rows, blocks_per_split, rows, needs_mask):
    c = pl.program_id(0)   # parallel split
    i = pl.program_id(1)   # reduction step within the split

    @pl.when(i == 0)
    def _init():
        inter_ref[...] = jnp.zeros_like(inter_ref)
        total_ref[...] = jnp.zeros_like(total_ref)

    # Cast in-kernel (VPU work, free under the DMA bound) -- inputs stream
    # from HBM in their original dtype.
    x = x_ref[...].astype(jnp.float32)
    y = y_ref[...].astype(jnp.float32)

    if needs_mask:
        # Rows at/after `rows` are either ragged-tail padding or clamped /
        # duplicate block data; zero them so both sums stay exact.
        row0 = (c * blocks_per_split + i) * block_rows
        rid = jax.lax.broadcasted_iota(jnp.int32, x.shape, 0) + row0
        valid = rid < rows
        x = jnp.where(valid, x, 0.0)
        y = jnp.where(valid, y, 0.0)

    # Keep the lane dimension: per-step sublane-only reduction; the single
    # cross-lane reduce happens once in the wrapper.
    inter_ref[...] += jnp.sum(x * y, axis=0, keepdims=True)[None]   # (1,1,128)
    total_ref[...] += jnp.sum(x + y, axis=0, keepdims=True)[None]   # (1,1,128)


def dice_loss_pallas(inputs, targets, smooth=1.0):
    """1 - (2*sum(x*y) + smooth) / (sum(x) + sum(y) + smooth) over all elems."""
    assert inputs.shape == targets.shape, (inputs.shape, targets.shape)
    x = inputs.reshape(-1)
    y = targets.reshape(-1)
    n = x.shape[0]

    # Zero-pad to a lane multiple only when the flat size is ragged; zeros
    # change neither sum(x*y) nor sum(x)+sum(y).
    rem = n % LANES
    if rem:
        pad = LANES - rem
        x = jnp.pad(x, (0, pad))
        y = jnp.pad(y, (0, pad))
    rows = x.shape[0] // LANES
    x2 = x.reshape(rows, LANES)
    y2 = y.reshape(rows, LANES)

    # block_rows == rows (full dim) when small, else a multiple of 8 -> the
    # (8, 128) BlockSpec constraint is always satisfied.
    block_rows = min(MAX_BLOCK_ROWS, rows)
    num_blocks = (rows + block_rows - 1) // block_rows
    num_splits = MAX_SPLITS if num_blocks >= MAX_SPLITS else 1
    blocks_per_split = (num_blocks + num_splits - 1) // num_splits
    needs_clamp = num_splits * blocks_per_split > num_blocks
    needs_mask = needs_clamp or (rows % block_rows != 0)

    if needs_clamp:
        def data_map(c, i):
            return (jnp.minimum(c * blocks_per_split + i, num_blocks - 1), 0)
    else:
        def data_map(c, i):
            return (c * blocks_per_split + i, 0)

    kernel = functools.partial(
        _dice_partial_kernel,
        block_rows=block_rows,
        blocks_per_split=blocks_per_split,
        rows=rows,
        needs_mask=needs_mask,
    )

    acc_spec = pl.BlockSpec((1, 1, LANES), lambda c, i: (c, 0, 0))
    inter_part, total_part = pl.pallas_call(
        kernel,
        out_shape=(
            jax.ShapeDtypeStruct((num_splits, 1, LANES), jnp.float32),
            jax.ShapeDtypeStruct((num_splits, 1, LANES), jnp.float32),
        ),
        grid=(num_splits, blocks_per_split),
        in_specs=[
            pl.BlockSpec((block_rows, LANES), data_map),
            pl.BlockSpec((block_rows, LANES), data_map),
        ],
        out_specs=(acc_spec, acc_spec),
        compiler_params=pltpu.CompilerParams(
            dimension_semantics=("parallel", "arbitrary"),
        ),
    )(x2, y2)

    # Tiny final reduce (<= 2*128 elems) + smoothed division in the wrapper.
    intersection = jnp.sum(inter_part)
    total = jnp.sum(total_part)          # == sum(inputs) + sum(targets)
    dice = (2.0 * intersection + smooth) / (total + smooth)
    return 1.0 - dice


def dice_loss_reference(inputs, targets, smooth=1.0):
    x = inputs.astype(jnp.float32)
    y = targets.astype(jnp.float32)
    intersection = jnp.sum(x * y)
    dice = (2.0 * intersection + smooth) / (jnp.sum(x) + jnp.sum(y) + smooth)
    return 1.0 - dice


if __name__ == "__main__":
    key = jax.random.PRNGKey(0)
    k1, k2 = jax.random.split(key)
    shape = (2, 4, 16, 16)  # small NCHW-style synthetic input
    inputs = jax.random.uniform(k1, shape, dtype=jnp.float32)             # prob-like
    targets = (jax.random.uniform(k2, shape) > 0.5).astype(jnp.float32)   # binary mask

    out = dice_loss_pallas(inputs, targets)
    out = jax.block_until_ready(out)

    ref = dice_loss_reference(inputs, targets)
    assert jnp.allclose(out, ref, rtol=1e-5, atol=1e-6), (out, ref)
    print("KERNEL_OK")
</pallas_src>

<mosaic_0001>
module attributes {stable_mosaic.version = 11 : i64} {
  func.func @_dice_partial_kernel(%arg0: i32, %arg1: i32, %arg2: memref<16x128xf32, #tpu.memory_space<vmem>>, %arg3: memref<16x128xf32, #tpu.memory_space<vmem>>, %arg4: memref<1x1x128xf32, #tpu.memory_space<vmem>>, %arg5: memref<1x1x128xf32, #tpu.memory_space<vmem>>) attributes {dimension_semantics = [#tpu.dimension_semantics<parallel>, #tpu.dimension_semantics<arbitrary>], iteration_bounds = array<i64: 1, 1>, scalar_prefetch = 0 : i64, scratch_operands = 0 : i64, tpu.core_type = #tpu.core_type<tc>, window_params = [{transform_indices = @transform_0, window_bounds = array<i64: 16, 128>}, {transform_indices = @transform_1, window_bounds = array<i64: 16, 128>}, {transform_indices = @transform_2, window_bounds = array<i64: 1, 1, 128>}, {transform_indices = @transform_3, window_bounds = array<i64: 1, 1, 128>}]} {
    %c0_i32 = arith.constant 0 : i32
    %0 = arith.cmpi eq, %arg1, %c0_i32 : i32
    %1 = arith.extui %0 : i1 to i32
    %c0_i32_0 = arith.constant 0 : i32
    %2 = arith.cmpi ne, %1, %c0_i32_0 : i32
    scf.if %2 {
      %cst_17 = arith.constant 0.000000e+00 : f32
      %19 = vector.broadcast %cst_17 : f32 to vector<1x1x128xf32>
      %c0_18 = arith.constant 0 : index
      %c0_19 = arith.constant 0 : index
      %c0_20 = arith.constant 0 : index
      %20 = vector.load %arg4[%c0_18, %c0_19, %c0_20] : memref<1x1x128xf32, #tpu.memory_space<vmem>>, vector<1x1x128xf32>
      tpu.vector_store %arg4[%c0_18, %c0_19, %c0_20], %19 {strides = array<i32>} : memref<1x1x128xf32, #tpu.memory_space<vmem>>, vector<1x1x128xf32>,
      %cst_21 = arith.constant 0.000000e+00 : f32
      %21 = vector.broadcast %cst_21 : f32 to vector<1x1x128xf32>
      %c0_22 = arith.constant 0 : index
      %c0_23 = arith.constant 0 : index
      %c0_24 = arith.constant 0 : index
      %22 = vector.load %arg5[%c0_22, %c0_23, %c0_24] : memref<1x1x128xf32, #tpu.memory_space<vmem>>, vector<1x1x128xf32>
      tpu.vector_store %arg5[%c0_22, %c0_23, %c0_24], %21 {strides = array<i32>} : memref<1x1x128xf32, #tpu.memory_space<vmem>>, vector<1x1x128xf32>,
    } else {
    }
    %c0 = arith.constant 0 : index
    %c0_1 = arith.constant 0 : index
    %3 = vector.load %arg2[%c0, %c0_1] : memref<16x128xf32, #tpu.memory_space<vmem>>, vector<16x128xf32>
    %c0_2 = arith.constant 0 : index
    %c0_3 = arith.constant 0 : index
    %4 = vector.load %arg3[%c0_2, %c0_3] : memref<16x128xf32, #tpu.memory_space<vmem>>, vector<16x128xf32>
    %c0_4 = arith.constant 0 : index
    %c0_5 = arith.constant 0 : index
    %c0_6 = arith.constant 0 : index
    %5 = vector.load %arg4[%c0_4, %c0_5, %c0_6] : memref<1x1x128xf32, #tpu.memory_space<vmem>>, vector<1x1x128xf32>
    %6 = arith.mulf %3, %4 : vector<16x128xf32>
    %cst = arith.constant dense<0.000000e+00> : vector<128xf32>
    %7 = vector.multi_reduction <add>, %6, %cst [0] : vector<16x128xf32> to vector<128xf32>
    %8 = vector.shape_cast %7 : vector<128xf32> to vector<1x128xf32>
    %9 = vector.shape_cast %8 : vector<1x128xf32> to vector<1x1x128xf32>
    %10 = arith.addf %5, %9 : vector<1x1x128xf32>
    %c0_7 = arith.constant 0 : index
    %c0_8 = arith.constant 0 : index
    %c0_9 = arith.constant 0 : index
    %11 = vector.load %arg4[%c0_7, %c0_8, %c0_9] : memref<1x1x128xf32, #tpu.memory_space<vmem>>, vector<1x1x128xf32>
    tpu.vector_store %arg4[%c0_7, %c0_8, %c0_9], %10 {strides = array<i32>} : memref<1x1x128xf32, #tpu.memory_space<vmem>>, vector<1x1x128xf32>,
    %c0_10 = arith.constant 0 : index
    %c0_11 = arith.constant 0 : index
    %c0_12 = arith.constant 0 : index
    %12 = vector.load %arg5[%c0_10, %c0_11, %c0_12] : memref<1x1x128xf32, #tpu.memory_space<vmem>>, vector<1x1x128xf32>
    %13 = arith.addf %3, %4 : vector<16x128xf32>
    %cst_13 = arith.constant dense<0.000000e+00> : vector<128xf32>
    %14 = vector.multi_reduction <add>, %13, %cst_13 [0] : vector<16x128xf32> to vector<128xf32>
    %15 = vector.shape_cast %14 : vector<128xf32> to vector<1x128xf32>
    %16 = vector.shape_cast %15 : vector<1x128xf32> to vector<1x1x128xf32>
    %17 = arith.addf %12, %16 : vector<1x1x128xf32>
    %c0_14 = arith.constant 0 : index
    %c0_15 = arith.constant 0 : index
    %c0_16 = arith.constant 0 : index
    %18 = vector.load %arg5[%c0_14, %c0_15, %c0_16] : memref<1x1x128xf32, #tpu.memory_space<vmem>>, vector<1x1x128xf32>
    tpu.vector_store %arg5[%c0_14, %c0_15, %c0_16], %17 {strides = array<i32>} : memref<1x1x128xf32, #tpu.memory_space<vmem>>, vector<1x1x128xf32>,
    return
  }
  func.func @transform_0(%arg0: i32, %arg1: i32) -> (i32, i32) {
    %c1_i32 = arith.constant 1 : i32
    %0 = arith.muli %arg0, %c1_i32 : i32
    %1 = arith.addi %0, %arg1 : i32
    %c0_i32 = arith.constant 0 : i32
    %c0_i32_0 = arith.constant 0 : i32
    return %1, %c0_i32 : i32, i32
  }
  func.func @transform_1(%arg0: i32, %arg1: i32) -> (i32, i32) {
    %c1_i32 = arith.constant 1 : i32
    %0 = arith.muli %arg0, %c1_i32 : i32
    %1 = arith.addi %0, %arg1 : i32
    %c0_i32 = arith.constant 0 : i32
    %c0_i32_0 = arith.constant 0 : i32
    return %1, %c0_i32 : i32, i32
  }
  func.func @transform_2(%arg0: i32, %arg1: i32) -> (i32, i32, i32) {
    %c0_i32 = arith.constant 0 : i32
    %c0_i32_0 = arith.constant 0 : i32
    %c0_i32_1 = arith.constant 0 : i32
    return %arg0, %c0_i32, %c0_i32_0 : i32, i32, i32
  }
  func.func @transform_3(%arg0: i32, %arg1: i32) -> (i32, i32, i32) {
    %c0_i32 = arith.constant 0 : i32
    %c0_i32_0 = arith.constant 0 : i32
    %c0_i32_1 = arith.constant 0 : i32
    return %arg0, %c0_i32, %c0_i32_0 : i32, i32, i32
  }
}

</mosaic_0001>

<llo_original>
// kernel: tpu_custom_call.1
$region0: #{tpu_custom_call.1}
  #allocation0 [shape = 'u32[]', space=smem, size = 0x4, offset = 0x4, fixed_abs, tag = 'smem constant byte address 0x4 - core index']
  #allocation1 [shape = 'u32[72,128]{1,0:T(1,128)}', space=vmem, size = 0x9000, scoped, tag = 'internal scratch']
  %s0 = inlined_call_operand.hbm [shape: f32[16,128], index: 0, kind: input, shape index: {}]
  %s1 = inlined_call_operand.hbm [shape: f32[16,128], index: 1, kind: input, shape index: {}]
  %s2 = inlined_call_operand.hbm [shape: f32[1,1,128], index: 2, kind: output, shape index: {0}]
  %s3 = inlined_call_operand.hbm [shape: f32[1,1,128], index: 3, kind: output, shape index: {1}]
  %4 = xla_tuple %s2, %s3
  %s5 = sld [smem:[#allocation0]]
  $region38: #{tpu_custom_call.1} parent=0
    _
  %s7 = ssub.s32 1, %s5
  %s8 = scalar_select 0, %s7, %s5
  $region1: #{tpu_custom_call.1} parent=0
    #allocation2 [shape = 'u8[8192]{0}', space=vmem, size = 0x2000, scoped, tag = 'input window, operand 0, single buffered']
    #allocation3 [shape = 's32[1]{0}', space=sflag, size = 0x4, scoped, tag = 'scoped memory for tpu_custom_call.1']
    #allocation4 [shape = 's32[1]{0}', space=sflag, size = 0x4, scoped, tag = 'scoped memory for tpu_custom_call.1']
    #allocation5 [shape = 'u8[8192]{0}', space=vmem, size = 0x2000, scoped, tag = 'input window, operand 1, single buffered']
    #allocation6 [shape = 's32[1]{0}', space=sflag, size = 0x4, scoped, tag = 'scoped memory for tpu_custom_call.1']
    #allocation7 [shape = 'u8[512]{0}', space=vmem, size = 0x400, scoped, tag = 'output window, operand 0, single buffered']
    #allocation8 [shape = 'u8[512]{0}', space=vmem, size = 0x400, scoped, tag = 'output window, operand 1, single buffered']
    #allocation9 [shape = 's32[1]{0}', space=sflag, size = 0x4, scoped, tag = 'scoped memory for tpu_custom_call.1']
    %9 = vsyncpa [#allocation3], 0
    %10 = vsyncpa [#allocation6], 0
    %11 = vsyncpa [#allocation4], 0
    %12 = vsyncpa [#allocation9], 0
    // Predicated region
    $region2: #{tpu_custom_call.1} parent=1 // pred_check
      _
    $region3: #{tpu_custom_call.1} parent=1 // pred_check_branch
      %14 = sbr.rel (0) target = $region5
    $region4: #{tpu_custom_call.1} parent=1 // pred_region
      %s15 = sadd.s32 0, 0
      %s16 = smul.u32 2, %s15
      %18 = vsyncadd [#allocation3], 0
      %s19 = smul.addr %s16, 8
      %s20 = scalar_lea.hbm %s0, %s19
      %s21 = sshll.u32 %s20, 4
      %s22 = int_to_ptr.hbm [resolvable:$true] %s21
      %s23 = sshll.u32 [#allocation2], 4
      %s24 = int_to_ptr.vmem [resolvable:$true] %s23
      %29 = dma.hbm_to_vmem [thread:$0]  %s22, 256, %s24, [#allocation3], 128, 128, 8
    $region5: #{tpu_custom_call.1} parent=1 // pred_fallthru
      _
    // Predicated region
    $region6: #{tpu_custom_call.1} parent=1 // pred_check
      _
    $region7: #{tpu_custom_call.1} parent=1 // pred_check_branch
      %31 = sbr.rel (0) target = $region9
    $region8: #{tpu_custom_call.1} parent=1 // pred_region
      %s32 = sadd.s32 0, 0
      %s33 = smul.u32 2, %s32
      %35 = vsyncadd [#allocation6], 0
      %s36 = smul.addr %s33, 8
      %s37 = scalar_lea.hbm %s1, %s36
      %s38 = sshll.u32 %s37, 4
      %s39 = int_to_ptr.hbm [resolvable:$true] %s38
      %s40 = sshll.u32 [#allocation5], 4
      %s41 = int_to_ptr.vmem [resolvable:$true] %s40
      %46 = dma.hbm_to_vmem [thread:$0]  %s39, 256, %s41, [#allocation6], 128, 128, 8
    $region9: #{tpu_custom_call.1} parent=1 // pred_fallthru
      _
    // Predicated region
    $region10: #{tpu_custom_call.1} parent=1 // pred_check
      _
    $region11: #{tpu_custom_call.1} parent=1 // pred_check_branch
      %48 = sbr.rel (0) target = $region13
    $region12: #{tpu_custom_call.1} parent=1 // pred_region
      %50 = dma.done [#allocation3], 256
    $region13: #{tpu_custom_call.1} parent=1 // pred_fallthru
      _
    // Predicated region
    $region14: #{tpu_custom_call.1} parent=1 // pred_check
      _
    $region15: #{tpu_custom_call.1} parent=1 // pred_check_branch
      %52 = sbr.rel (0) target = $region17
    $region16: #{tpu_custom_call.1} parent=1 // pred_region
      %54 = dma.done [#allocation6], 256
    $region17: #{tpu_custom_call.1} parent=1 // pred_fallthru
      _
    %s55 = sadd.s32 0, 0
    %s56 = smul.u32 2, %s55
    %s57 = sadd.s32 0, 0
    %s58 = smul.u32 2, %s57
    %p59 = scmp.eq.s32.totalorder 0, 0
    // Predicated region
    $region18: #{tpu_custom_call.1} parent=1 // pred_check
      %p60 = pneg %p59
    $region19: #{tpu_custom_call.1} parent=1 // pred_check_branch
      %62 = sbr.rel (%p60) target = $region21
    $region20: #{tpu_custom_call.1} parent=1 // pred_region
      %63 = vst [vmem:[#allocation7] sm:$0x1] 0.0
      %64 = vst [vmem:[#allocation8] sm:$0x1] 0.0
    $region21: #{tpu_custom_call.1} parent=1 // pred_fallthru
      _
    %v65 = vld [vmem:[#allocation2] sm:$0xff]
    %v66 = vld [vmem:[#allocation2 + $0x8] sm:$0xff]
    %v67 = vld [vmem:[#allocation5] sm:$0xff]
    %v68 = vld [vmem:[#allocation5 + $0x8] sm:$0xff]
    %v69 = vld [vmem:[#allocation7] sm:$0x1]
    %v70 = vmul.f32 %v65, %v67
    %v71 = vmul.f32 %v66, %v68
    %v72 = vadd.f32 %v70, %v71
    %v73 = vrot.slane %v72, 4
    %v74 = vadd.f32 %v72, %v73
    %v75 = vrot.slane %v74, 2
    %v76 = vadd.f32 %v74, %v75
    %v77 = vrot.slane %v76, 1
    %v78 = vadd.f32 %v76, %v77
    %v79 = vadd.f32 %v69, %v78
    %80 = vst [vmem:[#allocation7] sm:$0x1] %v79
    %v81 = vld [vmem:[#allocation8] sm:$0x1]
    %v82 = vadd.f32 %v65, %v67
    %v83 = vadd.f32 %v66, %v68
    %v84 = vadd.f32 %v82, %v83
    %v85 = vrot.slane %v84, 4
    %v86 = vadd.f32 %v84, %v85
    %v87 = vrot.slane %v86, 2
    %v88 = vadd.f32 %v86, %v87
    %v89 = vrot.slane %v88, 1
    %v90 = vadd.f32 %v88, %v89
    %v91 = vadd.f32 %v81, %v90
    %92 = vst [vmem:[#allocation8] sm:$0x1] %v91
    // Predicated region
    $region22: #{tpu_custom_call.1} parent=1 // pred_check
      _
    $region23: #{tpu_custom_call.1} parent=1 // pred_check_branch
      %94 = sbr.rel (0) target = $region25
    $region24: #{tpu_custom_call.1} parent=1 // pred_region
      %96 = vsyncadd [#allocation4], 0
      %s98 = sshll.u32 [#allocation7], 4
      %s99 = int_to_ptr.vmem [resolvable:$true] %s98
      %s100 = sshll.u32 %s2, 4
      %s101 = int_to_ptr.hbm [resolvable:$true] %s100
      %103 = dma.vmem_to_hbm [thread:$0]  %s99, 16, %s101, [#allocation4]
    $region25: #{tpu_custom_call.1} parent=1 // pred_fallthru
      _
    // Predicated region
    $region26: #{tpu_custom_call.1} parent=1 // pred_check
      _
    $region27: #{tpu_custom_call.1} parent=1 // pred_check_branch
      %105 = sbr.rel (0) target = $region29
    $region28: #{tpu_custom_call.1} parent=1 // pred_region
      %107 = vsyncadd [#allocation9], 0
      %s109 = sshll.u32 [#allocation8], 4
      %s110 = int_to_ptr.vmem [resolvable:$true] %s109
      %s111 = sshll.u32 %s3, 4
      %s112 = int_to_ptr.hbm [resolvable:$true] %s111
      %114 = dma.vmem_to_hbm [thread:$0]  %s110, 16, %s112, [#allocation9]
    $region29: #{tpu_custom_call.1} parent=1 // pred_fallthru
      _
    // Predicated region
    $region30: #{tpu_custom_call.1} parent=1 // pred_check
      _
    $region31: #{tpu_custom_call.1} parent=1 // pred_check_branch
      %116 = sbr.rel (0) target = $region33
    $region32: #{tpu_custom_call.1} parent=1 // pred_region
      %118 = dma.done [#allocation4], 16
    $region33: #{tpu_custom_call.1} parent=1 // pred_fallthru
      _
    // Predicated region
    $region34: #{tpu_custom_call.1} parent=1 // pred_check
      _
    $region35: #{tpu_custom_call.1} parent=1 // pred_check_branch
      %120 = sbr.rel (0) target = $region37
    $region36: #{tpu_custom_call.1} parent=1 // pred_region
      %122 = dma.done [#allocation9], 16
    $region37: #{tpu_custom_call.1} parent=1 // pred_fallthru
      _
    %123 = vsyncpa [#allocation3], 1
    %124 = vsyncpa [#allocation6], 1
    %125 = vsyncpa [#allocation4], 1
    %126 = vsyncpa [#allocation9], 1

</llo_original>
